<compile_context>
chip_gen: v7x
topology: tpu7x:2x2x1
jax: 0.10.0
libtpu: 0.0.40
codegen_flags: <defaults>
</compile_context>

<pallas_src>
import functools
import math

import jax
import jax.numpy as jnp
from jax.experimental import pallas as pl
from jax.experimental.pallas import tpu as pltpu


_TARGET_BLOCK_BYTES = 2 * 1024 * 1024   # ~2 MiB of x per grid step
_VMEM_LIMIT_BYTES = 32 * 1024 * 1024    # explicit budget, safe on v5e/v6e/v7x


# ----------------------------------------------------------------------------
# PE table (buffer setup -- plain JAX glue, deterministic, done once)
# ----------------------------------------------------------------------------
def make_pe_table(hidden_dim: int, max_len: int, dtype=jnp.float32) -> jnp.ndarray:
    position = jnp.arange(0, max_len, dtype=jnp.float32)[:, None]              # [L, 1]
    div_term = jnp.exp(
        jnp.arange(0, hidden_dim, 2, dtype=jnp.float32)
        * (-math.log(10000.0) / hidden_dim)
    )                                                                           # [H/2]
    pe = jnp.zeros((max_len, hidden_dim), dtype=jnp.float32)
    pe = pe.at[:, 0::2].set(jnp.sin(position * div_term))
    pe = pe.at[:, 1::2].set(jnp.cos(position * div_term))
    return pe.astype(dtype)


# ----------------------------------------------------------------------------
# Kernels (2D elementwise; pe broadcasts over rows when its block has 1 row)
# ----------------------------------------------------------------------------
def _pe_add_kernel(x_ref, pe_ref, o_ref):
    o_ref[...] = (x_ref[...] + pe_ref[...]).astype(o_ref.dtype)


def _pe_add_dropout_kernel(x_ref, pe_ref, bits_ref, o_ref, *, threshold, scale):
    y = x_ref[...] + pe_ref[...]
    keep = bits_ref[...] >= jnp.uint32(threshold)          # P(keep) = 1 - p
    o_ref[...] = jnp.where(keep, y * scale, jnp.zeros_like(y)).astype(o_ref.dtype)


# ----------------------------------------------------------------------------
# Tile-size heuristics
# ----------------------------------------------------------------------------
def _row_tile(seq_len: int, hidden: int, itemsize: int) -> int:
    ts = max(8, (_TARGET_BLOCK_BYTES // max(1, hidden * itemsize)) // 8 * 8)
    return seq_len if ts >= seq_len else ts


def _col_tile(batch: int, cols: int, itemsize: int) -> int:
    if cols <= 128:
        return cols
    tc = max(128, (_TARGET_BLOCK_BYTES // max(1, batch * itemsize)) // 128 * 128)
    return cols if tc >= cols else tc


# ----------------------------------------------------------------------------
# Wrapper (mirrors PositionalEncoding.forward)
# ----------------------------------------------------------------------------
def positional_encoding_forward(
    x: jnp.ndarray,
    pe: jnp.ndarray,
    *,
    dropout_p: float = 0.1,
    training: bool = False,
    rng_key=None,
) -> jnp.ndarray:
    """x: [B, S, H]; pe: [max_len, H].  Returns dropout(x + pe[:S])."""
    B, S, H = x.shape
    max_len = pe.shape[0]
    if S > max_len:                       # matches the PyTorch truncation branch
        x = x[:, :max_len, :]
        S = max_len
    pe_slice = pe[:S, :].astype(x.dtype)  # cast once in the wrapper, not per step

    apply_dropout = bool(training) and float(dropout_p) > 0.0
    if apply_dropout and float(dropout_p) >= 1.0:
        return jnp.zeros_like(x)

    itemsize = jnp.dtype(x.dtype).itemsize

    if apply_dropout:
        if rng_key is None:
            rng_key = jax.random.PRNGKey(0)
        # TODO(synk): on hardware where in-kernel pltpu.prng_random_bits lowers,
        # generating bits inside the kernel would remove this uint32 HBM stream.
        bits = jax.random.bits(rng_key, x.shape, dtype=jnp.uint32)
        threshold = min(int(round(float(dropout_p) * (1 << 32))), (1 << 32) - 1)
        kernel = functools.partial(
            _pe_add_dropout_kernel,
            threshold=threshold,
            scale=1.0 / (1.0 - float(dropout_p)),
        )
    else:
        bits = None
        kernel = _pe_add_kernel

    if H % 128 == 0:
        # Natural layout: lane-dense already; tile over (batch, seq-rows).
        ts = _row_tile(S, H, itemsize)
        grid = (B, pl.cdiv(S, ts))
        make_xo_spec = lambda: pl.BlockSpec((None, ts, H), lambda b, t: (b, t, 0))
        in_specs = [make_xo_spec(), pl.BlockSpec((ts, H), lambda b, t: (t, 0))]
        inputs = [x, pe_slice]
        if apply_dropout:
            in_specs.append(make_xo_spec())
            inputs.append(bits)
        return pl.pallas_call(
            kernel,
            out_shape=jax.ShapeDtypeStruct((B, S, H), x.dtype),
            grid=grid,
            in_specs=in_specs,
            out_specs=make_xo_spec(),
            compiler_params=pltpu.CompilerParams(
                dimension_semantics=("parallel", "parallel"),
                vmem_limit_bytes=_VMEM_LIMIT_BYTES,
            ),
        )(*inputs)

    # H not a multiple of 128: flatten (seq, hidden) so output blocks are
    # lane-dense multiples of 128 columns (avoids masked partial stores).
    cols = S * H
    tc = _col_tile(B, cols, itemsize)
    grid = (pl.cdiv(cols, tc),)
    x2 = x.reshape(B, cols)
    pe2 = pe_slice.reshape(1, cols)
    make_xo_spec = lambda: pl.BlockSpec((B, tc), lambda c: (0, c))
    in_specs = [make_xo_spec(), pl.BlockSpec((1, tc), lambda c: (0, c))]
    inputs = [x2, pe2]
    if apply_dropout:
        in_specs.append(make_xo_spec())
        inputs.append(bits.reshape(B, cols))
    out2 = pl.pallas_call(
        kernel,
        out_shape=jax.ShapeDtypeStruct((B, cols), x.dtype),
        grid=grid,
        in_specs=in_specs,
        out_specs=make_xo_spec(),
        compiler_params=pltpu.CompilerParams(
            dimension_semantics=("parallel",),
            vmem_limit_bytes=_VMEM_LIMIT_BYTES,
        ),
    )(*inputs)
    return out2.reshape(B, S, H)


# ----------------------------------------------------------------------------
# Main
# ----------------------------------------------------------------------------
def _check_train(out, ref, p):
    scaled = ref / (1.0 - p)
    ok = jnp.logical_or(
        jnp.isclose(out, 0.0, atol=1e-6),
        jnp.isclose(out, scaled, atol=1e-5, rtol=1e-5),
    )
    assert bool(jnp.all(ok)), "dropout-path element mismatch"
    keep_frac = float(jnp.mean((out != 0.0).astype(jnp.float32)))
    assert 0.6 < keep_frac <= 1.0, f"unreasonable keep fraction {keep_frac}"


if __name__ == "__main__":
    root = jax.random.PRNGKey(0)
    kx1, kx2, kd1, kd2 = jax.random.split(root, 4)
    p = 0.1

    # Case 1: H=32 (not a multiple of 128) -> flattened lane-dense path.
    B1, S1, H1 = 2, 8, 32
    pe_tab1 = make_pe_table(H1, max_len=64)
    x1 = jax.random.normal(kx1, (B1, S1, H1), dtype=jnp.float32)
    ref1 = x1 + pe_tab1[None, :S1, :]

    out1 = jax.block_until_ready(
        positional_encoding_forward(x1, pe_tab1, dropout_p=p, training=False))
    assert out1.shape == (B1, S1, H1)
    assert jnp.allclose(out1, ref1, atol=1e-6, rtol=1e-6), "eval-path mismatch (case 1)"

    out1t = jax.block_until_ready(
        positional_encoding_forward(x1, pe_tab1, dropout_p=p, training=True, rng_key=kd1))
    _check_train(out1t, ref1, p)

    # Case 2: H=128 (multiple of 128) -> natural (batch, seq-tile) path.
    B2, S2, H2 = 2, 16, 128
    pe_tab2 = make_pe_table(H2, max_len=32)
    x2 = jax.random.normal(kx2, (B2, S2, H2), dtype=jnp.float32)
    ref2 = x2 + pe_tab2[None, :S2, :]

    out2 = jax.block_until_ready(
        positional_encoding_forward(x2, pe_tab2, dropout_p=p, training=False))
    assert jnp.allclose(out2, ref2, atol=1e-6, rtol=1e-6), "eval-path mismatch (case 2)"

    out2t = jax.block_until_ready(
        positional_encoding_forward(x2, pe_tab2, dropout_p=p, training=True, rng_key=kd2))
    _check_train(out2t, ref2, p)

    print("KERNEL_OK")
</pallas_src>

<mosaic_0001>
module attributes {stable_mosaic.version = 11 : i64} {
  func.func @_pe_add_kernel(%arg0: i32, %arg1: memref<2x256xf32, #tpu.memory_space<vmem>>, %arg2: memref<1x256xf32, #tpu.memory_space<vmem>>, %arg3: memref<2x256xf32, #tpu.memory_space<vmem>>) attributes {dimension_semantics = [#tpu.dimension_semantics<parallel>], iteration_bounds = array<i64: 1>, scalar_prefetch = 0 : i64, scratch_operands = 0 : i64, tpu.core_type = #tpu.core_type<tc>, window_params = [{transform_indices = @transform_0, window_bounds = array<i64: 2, 256>}, {transform_indices = @transform_1, window_bounds = array<i64: 1, 256>}, {transform_indices = @transform_2, window_bounds = array<i64: 2, 256>}]} {
    %c0 = arith.constant 0 : index
    %c0_0 = arith.constant 0 : index
    %0 = vector.load %arg1[%c0, %c0_0] : memref<2x256xf32, #tpu.memory_space<vmem>>, vector<2x256xf32>
    %c0_1 = arith.constant 0 : index
    %c0_2 = arith.constant 0 : index
    %1 = vector.load %arg2[%c0_1, %c0_2] : memref<1x256xf32, #tpu.memory_space<vmem>>, vector<1x256xf32>
    %2 = vector.broadcast %1 : vector<1x256xf32> to vector<2x256xf32>
    %3 = arith.addf %0, %2 : vector<2x256xf32>
    %c0_3 = arith.constant 0 : index
    %c0_4 = arith.constant 0 : index
    %4 = vector.load %arg3[%c0_3, %c0_4] : memref<2x256xf32, #tpu.memory_space<vmem>>, vector<2x256xf32>
    tpu.vector_store %arg3[%c0_3, %c0_4], %3 {strides = array<i32>} : memref<2x256xf32, #tpu.memory_space<vmem>>, vector<2x256xf32>,
    return
  }
  func.func @transform_0(%arg0: i32) -> (i32, i32) {
    %c0_i32 = arith.constant 0 : i32
    %c0_i32_0 = arith.constant 0 : i32
    return %c0_i32, %arg0 : i32, i32
  }
  func.func @transform_1(%arg0: i32) -> (i32, i32) {
    %c0_i32 = arith.constant 0 : i32
    %c0_i32_0 = arith.constant 0 : i32
    return %c0_i32, %arg0 : i32, i32
  }
  func.func @transform_2(%arg0: i32) -> (i32, i32) {
    %c0_i32 = arith.constant 0 : i32
    %c0_i32_0 = arith.constant 0 : i32
    return %c0_i32, %arg0 : i32, i32
  }
}

</mosaic_0001>

<llo_original>
// kernel: tpu_custom_call.1
$region0: #{tpu_custom_call.1}
  #allocation0 [shape = 'u32[]', space=smem, size = 0x4, offset = 0x4, fixed_abs, tag = 'smem constant byte address 0x4 - core index']
  #allocation1 [shape = 'u32[144,128]{1,0:T(1,128)}', space=vmem, size = 0x12000, scoped, tag = 'internal scratch']
  %s0 = inlined_call_operand.hbm [shape: f32[2,256], index: 0, kind: input, shape index: {}]
  %s1 = inlined_call_operand.vmem [shape: f32[1,256], index: 1, kind: input, shape index: {}]
  %s2 = inlined_call_operand.hbm [shape: f32[2,256], index: 2, kind: output, shape index: {}]
  %s3 = sld [smem:[#allocation0]]
  $region22: #{tpu_custom_call.1} parent=0
    _
  %s5 = ssub.s32 1, %s3
  %s6 = scalar_select 0, %s5, %s3
  $region1: #{tpu_custom_call.1} parent=0
    #allocation2 [shape = 'u8[2048]{0}', space=vmem, size = 0x800, scoped, tag = 'input window, operand 0, single buffered']
    #allocation3 [shape = 's32[1]{0}', space=sflag, size = 0x4, scoped, tag = 'scoped memory for tpu_custom_call.1']
    #allocation4 [shape = 's32[1]{0}', space=sflag, size = 0x4, scoped, tag = 'scoped memory for tpu_custom_call.1']
    #allocation5 [shape = 'u8[2048]{0}', space=vmem, size = 0x800, scoped, tag = 'output window, operand 0, single buffered']
    %7 = vsyncpa [#allocation3], 0
    %8 = vsyncpa [#allocation4], 0
    // Predicated region
    $region2: #{tpu_custom_call.1} parent=1 // pred_check
      _
    $region3: #{tpu_custom_call.1} parent=1 // pred_check_branch
      %10 = sbr.rel (0) target = $region5
    $region4: #{tpu_custom_call.1} parent=1 // pred_region
      %s12 = ssub.s32 64, 64
      %13 = vsyncadd [#allocation3], %s12
      %s15 = sshll.u32 [#allocation2], 4
      %s16 = int_to_ptr.vmem [resolvable:$true] %s15
      %18 = dma.hbm_to_vmem [thread:$0]  %s0, 64, %s16, [#allocation3]
    $region5: #{tpu_custom_call.1} parent=1 // pred_fallthru
      _
    // Predicated region
    $region6: #{tpu_custom_call.1} parent=1 // pred_check
      _
    $region7: #{tpu_custom_call.1} parent=1 // pred_check_branch
      %20 = sbr.rel (0) target = $region9
    $region8: #{tpu_custom_call.1} parent=1 // pred_region
      _
    $region9: #{tpu_custom_call.1} parent=1 // pred_fallthru
      _
    // Predicated region
    $region10: #{tpu_custom_call.1} parent=1 // pred_check
      _
    $region11: #{tpu_custom_call.1} parent=1 // pred_check_branch
      %22 = sbr.rel (0) target = $region13
    $region12: #{tpu_custom_call.1} parent=1 // pred_region
      %23 = dma.done [#allocation3], 64
    $region13: #{tpu_custom_call.1} parent=1 // pred_fallthru
      _
    %v24 = vld [vmem:[#allocation2] sm:$0xf]
    %v25 = vld [vmem:[%s1] sm:$0x3]
    %v27 = vlaneseq
    %v28 = vshrl.u32 %v27, 7
    %v29 = vsub.s32 0, %v28
    %v30 = vrot.slane %v25, %v29
    %v31 = vlaneseq
    %v32 = vshrl.u32 %v31, 7
    %v33 = vsub.s32 1, %v32
    %v34 = vrot.slane %v25, %v33
    %v35 = vcombine.low %v30, %v34
    %v37 = vunpack.c.l.s4 1983009808
    %v38 = vunpack.c.0.s8 %v37
    %v39 = vlaneseq
    %v40 = vshrl.u32 %v39, 7
    %v41 = vsub.s32 %v38, %v40
    %v42 = vrot.slane %v35, %v41
    %v44 = vadd.f32 %v24, %v42
    %45 = vst [vmem:[#allocation5] sm:$0xf] %v44
    // Predicated region
    $region14: #{tpu_custom_call.1} parent=1 // pred_check
      _
    $region15: #{tpu_custom_call.1} parent=1 // pred_check_branch
      %47 = sbr.rel (0) target = $region17
    $region16: #{tpu_custom_call.1} parent=1 // pred_region
      %s49 = ssub.s32 64, 64
      %50 = vsyncadd [#allocation4], %s49
      %s52 = sshll.u32 [#allocation5], 4
      %s53 = int_to_ptr.vmem [resolvable:$true] %s52
      %55 = dma.vmem_to_hbm [thread:$0]  %s53, 64, %s2, [#allocation4]
    $region17: #{tpu_custom_call.1} parent=1 // pred_fallthru
      _
    // Predicated region
    $region18: #{tpu_custom_call.1} parent=1 // pred_check
      _
    $region19: #{tpu_custom_call.1} parent=1 // pred_check_branch
      %57 = sbr.rel (0) target = $region21
    $region20: #{tpu_custom_call.1} parent=1 // pred_region
      %58 = dma.done [#allocation4], 64
    $region21: #{tpu_custom_call.1} parent=1 // pred_fallthru
      _
    %59 = vsyncpa [#allocation3], 1
    %60 = vsyncpa [#allocation4], 1

</llo_original>
